<compile_context>
chip_gen: v7x
topology: tpu7x:2x2x1
jax: 0.10.0
libtpu: 0.0.40
codegen_flags: <defaults>
</compile_context>

<pallas_src>
import math
from functools import partial

import numpy as np
import jax
import jax.numpy as jnp
from jax import lax
from jax.experimental import pallas as pl
from jax.experimental.pallas import tpu as pltpu


def _round_up(a, b):
    return ((a + b - 1) // b) * b


# ----------------------------------------------------------------------------
# Activations
# ----------------------------------------------------------------------------
def _gelu_exact(v):
    # torch.nn.GELU() default (erf-based) — used by the pure-JAX reference.
    return 0.5 * v * (1.0 + lax.erf(v * (1.0 / math.sqrt(2.0))))


_GELU_C = math.sqrt(2.0 / math.pi)


def _gelu_tanh(v):
    # tanh-approximate GELU: the transcendental goes to the EUP slot (free
    # relative to the VALU), per perf review.  Max deviation from exact erf
    # GELU is ~3e-3 per activation.
    return 0.5 * v * (1.0 + jnp.tanh(_GELU_C * (v + 0.044715 * v * v * v)))


# ----------------------------------------------------------------------------
# Pallas kernel: fused (block-diag patch matmul -> GELU -> GELU -> proj + bias)
# ----------------------------------------------------------------------------
def _patch_extractor_kernel(x_ref, wbd_ref, wp_ref, b_ref, o_ref):
    # One bf16 MXU matmul replaces the 4 per-branch matmuls + concat:
    #   x_ref:   (tm, R*K)  bf16 concatenated per-branch patch features
    #   wbd_ref: (R*K, R*E) bf16 block-diagonal branch weights
    h = jnp.dot(x_ref[...], wbd_ref[...], preferred_element_type=jnp.float32)
    h = _gelu_tanh(h)            # per-branch activation (== post-concat GELU)
    h = _gelu_tanh(h)            # Sequential's extra activation
    # 1x1-conv projection; output padded to 128 lanes (lane-dense block),
    # bias is a full-vreg (1, Opad) f32 block.
    out = jnp.dot(h.astype(jnp.bfloat16), wp_ref[...],
                  preferred_element_type=jnp.float32) + b_ref[...]
    o_ref[...] = out.astype(o_ref.dtype)


# ----------------------------------------------------------------------------
# One-time parameter packing (hoisted out of the per-call forward)
# ----------------------------------------------------------------------------
def pack_patch_extractor_params(conv_weights, proj_weight, proj_bias):
    """Build the block-diagonal branch weight, padded projection and bias."""
    R = len(conv_weights)
    E, C, p, _ = conv_weights[0].shape
    K = C * p * p
    O = proj_weight.shape[0]
    Opad = max(128, _round_up(O, 128))

    w_bd = jnp.zeros((R * K, R * E), dtype=jnp.float32)
    for i, w in enumerate(conv_weights):
        w_bd = w_bd.at[i * K:(i + 1) * K, i * E:(i + 1) * E].set(
            w.reshape(E, K).T)

    wp = proj_weight.reshape(O, R * E).T                      # (R*E, O)
    wp = jnp.pad(wp, ((0, 0), (0, Opad - O)))
    bias = jnp.pad(proj_bias, (0, Opad - O)).reshape(1, Opad)

    return (w_bd.astype(jnp.bfloat16),
            wp.astype(jnp.bfloat16),
            bias.astype(jnp.float32))


# ----------------------------------------------------------------------------
# Row-tile selection: large tiles to amortize per-step overhead, >=2 (even)
# grid steps once N is big enough so v7x's two TensorCores both get work.
# ----------------------------------------------------------------------------
def _choose_row_tile(N):
    if N <= 2048:
        return _round_up(N, 16)                 # single step, bf16-aligned
    steps = -(-N // 2048)                       # cdiv
    steps = steps + (steps % 2)                 # even step count
    return min(2048, _round_up(-(-N // steps), 16))


# ----------------------------------------------------------------------------
# Wrapper: full PatchExtractor forward
# ----------------------------------------------------------------------------
@partial(jax.jit, static_argnames=("patch_size", "dilation_rates", "output_dim"))
def patch_extractor_forward(x, w_bd, wp, bias, *,
                            patch_size, dilation_rates, output_dim):
    B, C, H, W = x.shape
    p = patch_size
    R = len(dilation_rates)
    K = C * p * p
    RK = R * K
    RE = w_bd.shape[1]
    Opad = wp.shape[1]
    O = output_dim

    # ---- patch extraction: pad once (max dilation pad), bf16, 2 gathers/branch
    xb = x.astype(jnp.bfloat16)
    pads = [(p - 1) * r // 2 for r in dilation_rates]
    pad_max = max(pads)
    xp = jnp.pad(xb, ((0, 0), (0, 0), (pad_max, pad_max), (pad_max, pad_max)))
    Hp, Wp = H + 2 * pad_max, W + 2 * pad_max

    grids, g_list = [], []
    for r, pad in zip(dilation_rates, pads):
        Hr, Wr = H + 2 * pad, W + 2 * pad
        Gh = (Hr - r * (p - 1) - 1) // p + 1
        Gw = (Wr - r * (p - 1) - 1) // p + 1
        grids.append((Gh, Gw))
        off = pad_max - pad
        rows = ((np.arange(Gh)[:, None] * p
                 + np.arange(p)[None, :] * r).reshape(-1) + off)
        cols = ((np.arange(Gw)[:, None] * p
                 + np.arange(p)[None, :] * r).reshape(-1) + off)
        # explicit bounds check (jnp.take would silently clip OOB indices)
        assert rows.max() < Hp and rows.min() >= 0, "row index out of bounds"
        assert cols.max() < Wp and cols.min() >= 0, "col index out of bounds"
        g = jnp.take(xp, jnp.asarray(rows), axis=2)
        g = jnp.take(g, jnp.asarray(cols), axis=3)            # (B,C,Gh*p,Gw*p)
        g_list.append(g.reshape(B, C, Gh, p, Gw, p))

    # TODO(synk): branches with mismatched output grids would need the
    # F.interpolate(bilinear) fallback; at stride==kernel==patch_size all
    # branches match, so we assert instead of resampling.
    assert all(g == grids[0] for g in grids), "branch spatial sizes differ"
    Gh, Gw = grids[0]
    N = B * Gh * Gw

    # One stack + one transpose + one reshape builds the whole x_cat
    # (feature order per row: branch-major, then c, ky, kx — matches w_bd).
    stacked = jnp.stack(g_list, axis=0)                        # (R,B,C,Gh,p,Gw,p)
    x_cat = stacked.transpose(1, 3, 5, 0, 2, 4, 6).reshape(N, RK)

    # ---- row tiling ----------------------------------------------------------
    tm = _choose_row_tile(N)
    N_pad = _round_up(N, tm)
    if N_pad != N:
        x_cat = jnp.pad(x_cat, ((0, N_pad - N), (0, 0)))
    grid = (N_pad // tm,)

    cost = pl.CostEstimate(
        flops=2 * N_pad * (RK * RE + RE * Opad),
        transcendentals=2 * N_pad * RE,
        bytes_accessed=(N_pad * RK * 2 + RK * RE * 2 + RE * Opad * 2
                        + Opad * 4 + N_pad * Opad * 2),
    )

    out_flat = pl.pallas_call(
        _patch_extractor_kernel,
        out_shape=jax.ShapeDtypeStruct((N_pad, Opad), jnp.bfloat16),
        grid=grid,
        in_specs=[
            pl.BlockSpec((tm, RK), lambda i: (i, 0)),      # bf16 patch features
            pl.BlockSpec((RK, RE), lambda i: (0, 0)),      # bf16 block-diag weight
            pl.BlockSpec((RE, Opad), lambda i: (0, 0)),    # bf16 padded projection
            pl.BlockSpec((1, Opad), lambda i: (0, 0)),     # f32 padded bias
        ],
        out_specs=pl.BlockSpec((tm, Opad), lambda i: (i, 0)),
        compiler_params=pltpu.CompilerParams(
            dimension_semantics=("parallel",),
            vmem_limit_bytes=32 * 1024 * 1024),
        cost_estimate=cost,
    )(x_cat, w_bd, wp, bias)

    # Slice off padding, go to NCHW (required by the module), then cast back to
    # f32 — slice/reshape/transpose run on bf16 (half the bytes of before).
    out = (out_flat[:N, :O]
           .reshape(B, Gh, Gw, O)
           .transpose(0, 3, 1, 2)
           .astype(jnp.float32))
    return out


# ----------------------------------------------------------------------------
# Pure-JAX reference (lax.conv, exact erf GELU, f32) for correctness checking
# ----------------------------------------------------------------------------
def _reference_forward(x, conv_weights, proj_weight, proj_bias,
                       patch_size, dilation_rates):
    p = patch_size
    outs = []
    for w, r in zip(conv_weights, dilation_rates):
        pad = (p - 1) * r // 2
        y = lax.conv_general_dilated(
            x, w, window_strides=(p, p), padding=[(pad, pad), (pad, pad)],
            rhs_dilation=(r, r), dimension_numbers=("NCHW", "OIHW", "NCHW"))
        outs.append(_gelu_exact(y))
    h = _gelu_exact(jnp.concatenate(outs, axis=1))
    wp2d = proj_weight.reshape(proj_weight.shape[0], -1)
    out = jnp.einsum("bchw,oc->bohw", h, wp2d) + proj_bias[None, :, None, None]
    return out


# ----------------------------------------------------------------------------
if __name__ == "__main__":
    # Module hyper-parameters (small, consistent with PatchExtractor.__init__)
    patch_size = 4
    input_channels = 4
    embedding_dim = 32
    output_dim = 64
    dilation_rates = (1, 2, 3, 5)

    B, C, H, W = 2, input_channels, 16, 16

    key = jax.random.PRNGKey(0)
    kx, kw1, kw2, kw3, kw4, kwp, kb = jax.random.split(key, 7)

    x = jax.random.normal(kx, (B, C, H, W), dtype=jnp.float32)

    # Deterministic synthetic parameters (PyTorch shapes):
    #  MultiScaleConv branch weights: (embedding_dim, C, p, p), bias=False
    fan_in = C * patch_size * patch_size
    conv_weights = tuple(
        jax.random.normal(k, (embedding_dim, C, patch_size, patch_size),
                          dtype=jnp.float32) / math.sqrt(fan_in)
        for k in (kw1, kw2, kw3, kw4)
    )
    #  1x1 projection conv: (output_dim, 4*embedding_dim, 1, 1) + bias
    proj_weight = jax.random.normal(
        kwp, (output_dim, embedding_dim * len(dilation_rates), 1, 1),
        dtype=jnp.float32) / math.sqrt(embedding_dim * len(dilation_rates))
    proj_bias = jax.random.normal(kb, (output_dim,), dtype=jnp.float32) * 0.01

    # One-time parameter packing (hoisted out of the per-call forward).
    w_bd, wp, bias = pack_patch_extractor_params(conv_weights, proj_weight,
                                                 proj_bias)
    w_bd, wp, bias = jax.block_until_ready((w_bd, wp, bias))

    out = patch_extractor_forward(x, w_bd, wp, bias,
                                  patch_size=patch_size,
                                  dilation_rates=dilation_rates,
                                  output_dim=output_dim)
    out = jax.block_until_ready(out)

    ref = _reference_forward(x, conv_weights, proj_weight, proj_bias,
                             patch_size, dilation_rates)
    ref = jax.block_until_ready(ref)

    assert out.shape == (B, output_dim, H // patch_size, W // patch_size), out.shape
    # bf16 inputs/weights/output + tanh GELU => loosened tolerance (expected
    # precision change per review, not a bug).
    max_err = float(jnp.max(jnp.abs(out - ref)))
    assert jnp.allclose(out, ref, rtol=5e-2, atol=5e-2), max_err

    print("KERNEL_OK")
</pallas_src>

<mosaic_0001>
module attributes {stable_mosaic.version = 11 : i64} {
  func.func @_patch_extractor_kernel(%arg0: i32, %arg1: memref<32x256xbf16, #tpu.memory_space<vmem>>, %arg2: memref<256x128xbf16, #tpu.memory_space<vmem>>, %arg3: memref<128x128xbf16, #tpu.memory_space<vmem>>, %arg4: memref<1x128xf32, #tpu.memory_space<vmem>>, %arg5: memref<32x128xbf16, #tpu.memory_space<vmem>>) attributes {dimension_semantics = [#tpu.dimension_semantics<parallel>], iteration_bounds = array<i64: 1>, scalar_prefetch = 0 : i64, scratch_operands = 0 : i64, tpu.core_type = #tpu.core_type<tc>, window_params = [{transform_indices = @transform_0, window_bounds = array<i64: 32, 256>}, {pipeline_mode = #tpu.pipeline_mode<synchronous>, transform_indices = @transform_1, window_bounds = array<i64: 256, 128>}, {pipeline_mode = #tpu.pipeline_mode<synchronous>, transform_indices = @transform_2, window_bounds = array<i64: 128, 128>}, {pipeline_mode = #tpu.pipeline_mode<synchronous>, transform_indices = @transform_3, window_bounds = array<i64: 1, 128>}, {transform_indices = @transform_4, window_bounds = array<i64: 32, 128>}]} {
    %c0 = arith.constant 0 : index
    %c0_0 = arith.constant 0 : index
    %0 = vector.load %arg1[%c0, %c0_0] : memref<32x256xbf16, #tpu.memory_space<vmem>>, vector<32x256xbf16>
    %c0_1 = arith.constant 0 : index
    %c0_2 = arith.constant 0 : index
    %1 = vector.load %arg2[%c0_1, %c0_2] : memref<256x128xbf16, #tpu.memory_space<vmem>>, vector<256x128xbf16>
    %cst = arith.constant dense<0.000000e+00> : vector<32x128xf32>
    %2 = tpu.matmul %0, %1, %cst {dimension_numbers = #tpu.dot_dimension_numbers<[1], [0], [0], [1], [0, 0, 1, 1], [], []>} : vector<32x256xbf16>, vector<256x128xbf16>, vector<32x128xf32> -> vector<32x128xf32>
    %cst_3 = arith.constant 5.000000e-01 : f32
    %3 = vector.broadcast %cst_3 : f32 to vector<32x128xf32>
    %4 = arith.mulf %3, %2 : vector<32x128xf32>
    %cst_4 = arith.constant 4.471500e-02 : f32
    %5 = vector.broadcast %cst_4 : f32 to vector<32x128xf32>
    %6 = arith.mulf %5, %2 : vector<32x128xf32>
    %7 = arith.mulf %6, %2 : vector<32x128xf32>
    %8 = arith.mulf %7, %2 : vector<32x128xf32>
    %9 = arith.addf %2, %8 : vector<32x128xf32>
    %cst_5 = arith.constant 0.797884583 : f32
    %10 = vector.broadcast %cst_5 : f32 to vector<32x128xf32>
    %11 = arith.mulf %10, %9 : vector<32x128xf32>
    %12 = math.tanh %11 : vector<32x128xf32>
    %cst_6 = arith.constant 1.000000e+00 : f32
    %13 = vector.broadcast %cst_6 : f32 to vector<32x128xf32>
    %14 = arith.addf %13, %12 : vector<32x128xf32>
    %15 = arith.mulf %4, %14 : vector<32x128xf32>
    %cst_7 = arith.constant 5.000000e-01 : f32
    %16 = vector.broadcast %cst_7 : f32 to vector<32x128xf32>
    %17 = arith.mulf %16, %15 : vector<32x128xf32>
    %cst_8 = arith.constant 4.471500e-02 : f32
    %18 = vector.broadcast %cst_8 : f32 to vector<32x128xf32>
    %19 = arith.mulf %18, %15 : vector<32x128xf32>
    %20 = arith.mulf %19, %15 : vector<32x128xf32>
    %21 = arith.mulf %20, %15 : vector<32x128xf32>
    %22 = arith.addf %15, %21 : vector<32x128xf32>
    %cst_9 = arith.constant 0.797884583 : f32
    %23 = vector.broadcast %cst_9 : f32 to vector<32x128xf32>
    %24 = arith.mulf %23, %22 : vector<32x128xf32>
    %25 = math.tanh %24 : vector<32x128xf32>
    %cst_10 = arith.constant 1.000000e+00 : f32
    %26 = vector.broadcast %cst_10 : f32 to vector<32x128xf32>
    %27 = arith.addf %26, %25 : vector<32x128xf32>
    %28 = arith.mulf %17, %27 : vector<32x128xf32>
    %29 = arith.truncf %28 : vector<32x128xf32> to vector<32x128xbf16>
    %c0_11 = arith.constant 0 : index
    %c0_12 = arith.constant 0 : index
    %30 = vector.load %arg3[%c0_11, %c0_12] : memref<128x128xbf16, #tpu.memory_space<vmem>>, vector<128x128xbf16>
    %cst_13 = arith.constant dense<0.000000e+00> : vector<32x128xf32>
    %31 = tpu.matmul %29, %30, %cst_13 {dimension_numbers = #tpu.dot_dimension_numbers<[1], [0], [0], [1], [0, 0, 1, 1], [], []>} : vector<32x128xbf16>, vector<128x128xbf16>, vector<32x128xf32> -> vector<32x128xf32>
    %c0_14 = arith.constant 0 : index
    %c0_15 = arith.constant 0 : index
    %32 = vector.load %arg4[%c0_14, %c0_15] : memref<1x128xf32, #tpu.memory_space<vmem>>, vector<1x128xf32>
    %33 = vector.broadcast %32 : vector<1x128xf32> to vector<32x128xf32>
    %34 = arith.addf %31, %33 : vector<32x128xf32>
    %35 = arith.truncf %34 : vector<32x128xf32> to vector<32x128xbf16>
    %c0_16 = arith.constant 0 : index
    %c0_17 = arith.constant 0 : index
    %36 = vector.load %arg5[%c0_16, %c0_17] : memref<32x128xbf16, #tpu.memory_space<vmem>>, vector<32x128xbf16>
    tpu.vector_store %arg5[%c0_16, %c0_17], %35 {strides = array<i32>} : memref<32x128xbf16, #tpu.memory_space<vmem>>, vector<32x128xbf16>,
    return
  }
  func.func @transform_0(%arg0: i32) -> (i32, i32) {
    %c0_i32 = arith.constant 0 : i32
    %c0_i32_0 = arith.constant 0 : i32
    return %arg0, %c0_i32 : i32, i32
  }
  func.func @transform_1(%arg0: i32) -> (i32, i32) {
    %c0_i32 = arith.constant 0 : i32
    %c0_i32_0 = arith.constant 0 : i32
    %c0_i32_1 = arith.constant 0 : i32
    return %c0_i32, %c0_i32_0 : i32, i32
  }
  func.func @transform_2(%arg0: i32) -> (i32, i32) {
    %c0_i32 = arith.constant 0 : i32
    %c0_i32_0 = arith.constant 0 : i32
    %c0_i32_1 = arith.constant 0 : i32
    return %c0_i32, %c0_i32_0 : i32, i32
  }
  func.func @transform_3(%arg0: i32) -> (i32, i32) {
    %c0_i32 = arith.constant 0 : i32
    %c0_i32_0 = arith.constant 0 : i32
    %c0_i32_1 = arith.constant 0 : i32
    return %c0_i32, %c0_i32_0 : i32, i32
  }
  func.func @transform_4(%arg0: i32) -> (i32, i32) {
    %c0_i32 = arith.constant 0 : i32
    %c0_i32_0 = arith.constant 0 : i32
    return %arg0, %c0_i32 : i32, i32
  }
}

</mosaic_0001>

<llo_original>
// kernel: patch_extractor_forward.1
$region0: #{patch_extractor_forward.1}
  #allocation0 [shape = 'u32[]', space=smem, size = 0x4, offset = 0x4, fixed_abs, tag = 'smem constant byte address 0x4 - core index']
  #allocation1 [shape = 'u32[144,128]{1,0:T(1,128)}', space=vmem, size = 0x12000, scoped, tag = 'internal scratch']
  %s0 = inlined_call_operand.vmem [shape: bf16[32,256], index: 0, kind: input, shape index: {}]
  %s1 = inlined_call_operand.vmem [shape: bf16[256,128], index: 1, kind: input, shape index: {}]
  %s2 = inlined_call_operand.vmem [shape: bf16[128,128], index: 2, kind: input, shape index: {}]
  %s3 = inlined_call_operand.vmem [shape: f32[1,128], index: 3, kind: input, shape index: {}]
  %s4 = inlined_call_operand.vmem [shape: bf16[32,128], index: 4, kind: output, shape index: {}]
  %s5 = sld [smem:[#allocation0]]
  $region26: #{patch_extractor_forward.1} parent=0
    _
  %s7 = ssub.s32 1, %s5
  %s8 = scalar_select 0, %s7, %s5
  // Predicated region
  $region2: #{patch_extractor_forward.1} parent=0 // pred_check
    _
  $region3: #{patch_extractor_forward.1} parent=0 // pred_check_branch
    %10 = sbr.rel (0) target = $region5
  $region4: #{patch_extractor_forward.1} parent=0 // pred_region
    _
  $region5: #{patch_extractor_forward.1} parent=0 // pred_fallthru
    _
  // Predicated region
  $region6: #{patch_extractor_forward.1} parent=0 // pred_check
    _
  $region7: #{patch_extractor_forward.1} parent=0 // pred_check_branch
    %12 = sbr.rel (0) target = $region9
  $region8: #{patch_extractor_forward.1} parent=0 // pred_region
    _
  $region9: #{patch_extractor_forward.1} parent=0 // pred_fallthru
    _
  // Predicated region
  $region10: #{patch_extractor_forward.1} parent=0 // pred_check
    _
  $region11: #{patch_extractor_forward.1} parent=0 // pred_check_branch
    %14 = sbr.rel (0) target = $region13
  $region12: #{patch_extractor_forward.1} parent=0 // pred_region
    _
  $region13: #{patch_extractor_forward.1} parent=0 // pred_fallthru
    _
  // Predicated region
  $region14: #{patch_extractor_forward.1} parent=0 // pred_check
    _
  $region15: #{patch_extractor_forward.1} parent=0 // pred_check_branch
    %16 = sbr.rel (0) target = $region17
  $region16: #{patch_extractor_forward.1} parent=0 // pred_region
    _
  $region17: #{patch_extractor_forward.1} parent=0 // pred_fallthru
    _
  %v18 = vld [vmem:[%s0] sm:$0xff]
  %v19 = vld [vmem:[%s0 + $0x8] sm:$0xff]
  %v20 = vld [vmem:[%s0 + $0x10] sm:$0xff]
  %v21 = vld [vmem:[%s0 + $0x18] sm:$0xff]
  %v22 = vld [vmem:[%s1] sm:$0xf]
  %v23 = vld [vmem:[%s1 + $0x4] sm:$0xf]
  %v24 = vld [vmem:[%s1 + $0x8] sm:$0xf]
  %v25 = vld [vmem:[%s1 + $0xc] sm:$0xf]
  %v26 = vld [vmem:[%s1 + $0x10] sm:$0xf]
  %v27 = vld [vmem:[%s1 + $0x14] sm:$0xf]
  %v28 = vld [vmem:[%s1 + $0x18] sm:$0xf]
  %v29 = vld [vmem:[%s1 + $0x1c] sm:$0xf]
  %v30 = vld [vmem:[%s1 + $0x20] sm:$0xf]
  %v31 = vld [vmem:[%s1 + $0x24] sm:$0xf]
  %v32 = vld [vmem:[%s1 + $0x28] sm:$0xf]
  %v33 = vld [vmem:[%s1 + $0x2c] sm:$0xf]
  %v34 = vld [vmem:[%s1 + $0x30] sm:$0xf]
  %v35 = vld [vmem:[%s1 + $0x34] sm:$0xf]
  %v36 = vld [vmem:[%s1 + $0x38] sm:$0xf]
  %v37 = vld [vmem:[%s1 + $0x3c] sm:$0xf]
  %v38 = vld [vmem:[%s1 + $0x40] sm:$0xf]
  %v39 = vld [vmem:[%s1 + $0x44] sm:$0xf]
  %v40 = vld [vmem:[%s1 + $0x48] sm:$0xf]
  %v41 = vld [vmem:[%s1 + $0x4c] sm:$0xf]
  %v42 = vld [vmem:[%s1 + $0x50] sm:$0xf]
  %v43 = vld [vmem:[%s1 + $0x54] sm:$0xf]
  %v44 = vld [vmem:[%s1 + $0x58] sm:$0xf]
  %v45 = vld [vmem:[%s1 + $0x5c] sm:$0xf]
  %v46 = vld [vmem:[%s1 + $0x60] sm:$0xf]
  %v47 = vld [vmem:[%s1 + $0x64] sm:$0xf]
  %v48 = vld [vmem:[%s1 + $0x68] sm:$0xf]
  %v49 = vld [vmem:[%s1 + $0x6c] sm:$0xf]
  %v50 = vld [vmem:[%s1 + $0x70] sm:$0xf]
  %v51 = vld [vmem:[%s1 + $0x74] sm:$0xf]
  %v52 = vld [vmem:[%s1 + $0x78] sm:$0xf]
  %v53 = vld [vmem:[%s1 + $0x7c] sm:$0xf]
  %v58 = vunpack.c.l.b16 %v18
  %v59 = vunpack.c.h.b16 %v18
  %v60 = vunpack.c.l.b16 %v19
  %v61 = vunpack.c.h.b16 %v19
  %v62 = vunpack.c.l.b16 %v20
  %v63 = vunpack.c.h.b16 %v20
  %v64 = vunpack.c.l.b16 %v21
  %v65 = vunpack.c.h.b16 %v21
  %v66 = vpack.c.b16 %v60, %v58
  %v67 = vpack.c.b16 %v61, %v59
  %v68 = vpack.c.b16 %v64, %v62
  %v69 = vpack.c.b16 %v65, %v63
  %v106 = vunpack.c.l.b16 %v22
  %v107 = vunpack.c.l.b16 %v23
  %v108 = vunpack.c.l.b16 %v24
  %v109 = vunpack.c.l.b16 %v25
  %v110 = vunpack.c.l.b16 %v26
  %v111 = vunpack.c.l.b16 %v27
  %v112 = vunpack.c.l.b16 %v28
  %v113 = vunpack.c.l.b16 %v29
  %v114 = vunpack.c.l.b16 %v30
  %v115 = vunpack.c.l.b16 %v31
  %v116 = vunpack.c.l.b16 %v32
  %v117 = vunpack.c.l.b16 %v33
  %v118 = vunpack.c.l.b16 %v34
  %v119 = vunpack.c.l.b16 %v35
  %v120 = vunpack.c.l.b16 %v36
  %v121 = vunpack.c.l.b16 %v37
  %v122 = vunpack.c.l.b16 %v38
  %v123 = vunpack.c.l.b16 %v39
  %v124 = vunpack.c.l.b16 %v40
  %v125 = vunpack.c.l.b16 %v41
  %v126 = vunpack.c.l.b16 %v42
  %v127 = vunpack.c.l.b16 %v43
  %v128 = vunpack.c.l.b16 %v44
  %v129 = vunpack.c.l.b16 %v45
  %v130 = vunpack.c.l.b16 %v46
  %v131 = vunpack.c.l.b16 %v47
  %v132 = vunpack.c.l.b16 %v48
  %v133 = vunpack.c.l.b16 %v49
  %v134 = vunpack.c.l.b16 %v50
  %v135 = vunpack.c.l.b16 %v51
  %v136 = vunpack.c.l.b16 %v52
  %v137 = vunpack.c.l.b16 %v53
  %v138 = vpack.c.b16 %v107, %v106
  %v139 = vpack.c.b16 %v109, %v108
  %v140 = vpack.c.b16 %v111, %v110
  %v141 = vpack.c.b16 %v113, %v112
  %v142 = vpack.c.b16 %v115, %v114
  %v143 = vpack.c.b16 %v117, %v116
  %v144 = vpack.c.b16 %v119, %v118
  %v145 = vpack.c.b16 %v121, %v120
  %v146 = vpack.c.b16 %v123, %v122
  %v147 = vpack.c.b16 %v125, %v124
  %v148 = vpack.c.b16 %v127, %v126
  %v149 = vpack.c.b16 %v129, %v128
  %v150 = vpack.c.b16 %v131, %v130
  %v151 = vpack.c.b16 %v133, %v132
  %v152 = vpack.c.b16 %v135, %v134
  %v153 = vpack.c.b16 %v137, %v136
  %170 = vmatprep.subr.bf16.mxu0 0
  %171 = vmatpush1.bf16.msra.mxu0 %v138
  %172 = vmatprep.subr.bf16.mxu0 0
  %173 = vmatpush1.bf16.msra.mxu0 %v139
  %174 = vmatprep.subr.bf16.mxu0 0
  %175 = vmatpush1.bf16.msra.mxu0 %v140
  %176 = vmatprep.subr.bf16.mxu0 0
  %177 = vmatpush1.bf16.msra.mxu0 %v141
  %178 = vmatprep.subr.bf16.mxu0 0
  %179 = vmatpush1.bf16.msra.mxu0 %v142
  %180 = vmatprep.subr.bf16.mxu0 0
  %181 = vmatpush1.bf16.msra.mxu0 %v143
  %182 = vmatprep.subr.bf16.mxu0 0
  %183 = vmatpush1.bf16.msra.mxu0 %v144
  %184 = vmatprep.subr.bf16.mxu0 0
  %185 = vmatpush1.bf16.msra.mxu0 %v145
  %186 = vmatprep.subr.bf16.mxu0 0
  %187 = vmatpush1.bf16.msra.mxu0 %v146
  %188 = vmatprep.subr.bf16.mxu0 0
  %189 = vmatpush1.bf16.msra.mxu0 %v147
  %190 = vmatprep.subr.bf16.mxu0 0
  %191 = vmatpush1.bf16.msra.mxu0 %v148
  %192 = vmatprep.subr.bf16.mxu0 0
  %193 = vmatpush1.bf16.msra.mxu0 %v149
  %194 = vmatprep.subr.bf16.mxu0 0
  %195 = vmatpush1.bf16.msra.mxu0 %v150
  %196 = vmatprep.subr.bf16.mxu0 0
  %197 = vmatpush1.bf16.msra.mxu0 %v151
  %198 = vmatprep.subr.bf16.mxu0 0
  %199 = vmatpush1.bf16.msra.mxu0 %v152
  %200 = vmatprep.subr.bf16.mxu0 0
  %201 = vmatpush1.bf16.msra.mxu0 %v153
  %202 = vmatprep.mubr.bf16.mxu0 %v67
  %203 = vmatmul.mubr.bf16.gmra.mrb[0].mxu0 %v66
  %v204 = vpop.f32.mrb[0].mxu0
  %v205 = vadd.f32 0.0, %v204
  %v206 = vpop.f32.mrb[0].mxu0
  %v207 = vpop.f32.mrb[0].mxu0
  %v208 = vadd.f32 0.0, %v207
  %v209 = vpop.f32.mrb[0].mxu0
  %210 = vmatprep.mubr.bf16.mxu0 %v69
  %211 = vmatmul.mubr.bf16.gmra.mrb[0].mxu0 %v68
  %v212 = vpop.f32.mrb[0].mxu0
  %v213 = vadd.f32 0.0, %v212
  %v214 = vpop.f32.mrb[0].mxu0
  %v215 = vpop.f32.mrb[0].mxu0
  %v216 = vadd.f32 0.0, %v215
  %v217 = vpop.f32.mrb[0].mxu0
  %218 = vdwg.mxu0
  %v219 = vmul.f32 %v205, 0.5
  %v220 = vmul.f32 %v208, 0.5
  %v221 = vmul.f32 %v213, 0.5
  %v222 = vmul.f32 %v216, 0.5
  %v223 = vmul.f32 %v205, 0.044715
  %v224 = vmul.f32 %v208, 0.044715
  %v225 = vmul.f32 %v213, 0.044715
  %v226 = vmul.f32 %v216, 0.044715
  %v227 = vmul.f32 %v223, %v205
  %v228 = vmul.f32 %v224, %v208
  %v229 = vmul.f32 %v225, %v213
  %v230 = vmul.f32 %v226, %v216
  %v231 = vmul.f32 %v227, %v205
  %v232 = vmul.f32 %v228, %v208
  %v233 = vmul.f32 %v229, %v213
  %v234 = vmul.f32 %v230, %v216
  %v235 = vadd.f32 %v205, %v231
  %v236 = vadd.f32 %v208, %v232
  %v237 = vadd.f32 %v213, %v233
  %v238 = vadd.f32 %v216, %v234
  %v239 = vmul.f32 %v235, 0.7978846
  %v240 = vmul.f32 %v236, 0.7978846
  %v241 = vmul.f32 %v237, 0.7978846
  %v242 = vmul.f32 %v238, 0.7978846
  %v243 = vtanh.pop %v239
  %v244 = vtanh.pop %v240
  %v245 = vtanh.pop %v241
  %v246 = vtanh.pop %v242
  %v247 = vadd.f32 %v243, 1.0
  %v248 = vadd.f32 %v244, 1.0
  %v249 = vadd.f32 %v245, 1.0
  %v250 = vadd.f32 %v246, 1.0
  %v251 = vmul.f32 %v219, %v247
  %v252 = vmul.f32 %v220, %v248
  %v253 = vmul.f32 %v221, %v249
  %v254 = vmul.f32 %v222, %v250
  %v255 = vmul.f32 %v251, 0.5
  %v256 = vmul.f32 %v252, 0.5
  %v257 = vmul.f32 %v253, 0.5
  %v258 = vmul.f32 %v254, 0.5
  %v259 = vmul.f32 %v251, 0.044715
  %v260 = vmul.f32 %v252, 0.044715
  %v261 = vmul.f32 %v253, 0.044715
  %v262 = vmul.f32 %v254, 0.044715
  %v263 = vmul.f32 %v259, %v251
  %v264 = vmul.f32 %v260, %v252
  %v265 = vmul.f32 %v261, %v253
  %v266 = vmul.f32 %v262, %v254
  %v267 = vmul.f32 %v263, %v251
  %v268 = vmul.f32 %v264, %v252
  %v269 = vmul.f32 %v265, %v253
  %v270 = vmul.f32 %v266, %v254
  %v271 = vadd.f32 %v251, %v267
  %v272 = vadd.f32 %v252, %v268
  %v273 = vadd.f32 %v253, %v269
  %v274 = vadd.f32 %v254, %v270
  %v275 = vmul.f32 %v271, 0.7978846
  %v276 = vmul.f32 %v272, 0.7978846
  %v277 = vmul.f32 %v273, 0.7978846
  %v278 = vmul.f32 %v274, 0.7978846
  %v279 = vtanh.pop %v275
  %v280 = vtanh.pop %v276
  %v281 = vtanh.pop %v277
  %v282 = vtanh.pop %v278
  %v283 = vadd.f32 %v279, 1.0
  %v284 = vadd.f32 %v280, 1.0
  %v285 = vadd.f32 %v281, 1.0
  %v286 = vadd.f32 %v282, 1.0
  %v287 = vmul.f32 %v255, %v283
  %v288 = vmul.f32 %v256, %v284
  %v289 = vmul.f32 %v257, %v285
  %v290 = vmul.f32 %v258, %v286
  %v291 = vpack.c.bf16 %v288, %v287
  %v292 = vpack.c.bf16 %v290, %v289
  %v293 = vld [vmem:[%s2] sm:$0xf]
  %v294 = vld [vmem:[%s2 + $0x4] sm:$0xf]
  %v295 = vld [vmem:[%s2 + $0x8] sm:$0xf]
  %v296 = vld [vmem:[%s2 + $0xc] sm:$0xf]
  %v297 = vld [vmem:[%s2 + $0x10] sm:$0xf]
  %v298 = vld [vmem:[%s2 + $0x14] sm:$0xf]
  %v299 = vld [vmem:[%s2 + $0x18] sm:$0xf]
  %v300 = vld [vmem:[%s2 + $0x1c] sm:$0xf]
  %v301 = vld [vmem:[%s2 + $0x20] sm:$0xf]
  %v302 = vld [vmem:[%s2 + $0x24] sm:$0xf]
  %v303 = vld [vmem:[%s2 + $0x28] sm:$0xf]
  %v304 = vld [vmem:[%s2 + $0x2c] sm:$0xf]
  %v305 = vld [vmem:[%s2 + $0x30] sm:$0xf]
  %v306 = vld [vmem:[%s2 + $0x34] sm:$0xf]
  %v307 = vld [vmem:[%s2 + $0x38] sm:$0xf]
  %v308 = vld [vmem:[%s2 + $0x3c] sm:$0xf]
  %v309 = vld [vmem:[%s3] sm:$0x1]
  %v311 = vlaneseq
  %v312 = vshrl.u32 %v311, 7
  %v313 = vsub.s32 0, %v312
  %v314 = vrot.slane %v309, %v313
  %v332 = vunpack.c.l.b16 %v293
  %v333 = vunpack.c.l.b16 %v294
  %v334 = vunpack.c.l.b16 %v295
  %v335 = vunpack.c.l.b16 %v296
  %v336 = vunpack.c.l.b16 %v297
  %v337 = vunpack.c.l.b16 %v298
  %v338 = vunpack.c.l.b16 %v299
  %v339 = vunpack.c.l.b16 %v300
  %v340 = vunpack.c.l.b16 %v301
  %v341 = vunpack.c.l.b16 %v302
  %v342 = vunpack.c.l.b16 %v303
  %v343 = vunpack.c.l.b16 %v304
  %v344 = vunpack.c.l.b16 %v305
  %v345 = vunpack.c.l.b16 %v306
  %v346 = vunpack.c.l.b16 %v307
  %v347 = vunpack.c.l.b16 %v308
  %v348 = vpack.c.b16 %v333, %v332
  %v349 = vpack.c.b16 %v335, %v334
  %v350 = vpack.c.b16 %v337, %v336
  %v351 = vpack.c.b16 %v339, %v338
  %v352 = vpack.c.b16 %v341, %v340
  %v353 = vpack.c.b16 %v343, %v342
  %v354 = vpack.c.b16 %v345, %v344
  %v355 = vpack.c.b16 %v347, %v346
  %364 = vmatprep.subr.bf16.mxu0 0
  %365 = vmatpush1.bf16.msra.mxu0 %v348
  %366 = vmatprep.subr.bf16.mxu0 0
  %367 = vmatpush1.bf16.msra.mxu0 %v349
  %368 = vmatprep.subr.bf16.mxu0 0
  %369 = vmatpush1.bf16.msra.mxu0 %v350
  %370 = vmatprep.subr.bf16.mxu0 0
  %371 = vmatpush1.bf16.msra.mxu0 %v351
  %372 = vmatprep.subr.bf16.mxu0 0
  %373 = vmatpush1.bf16.msra.mxu0 %v352
  %374 = vmatprep.subr.bf16.mxu0 0
  %375 = vmatpush1.bf16.msra.mxu0 %v353
  %376 = vmatprep.subr.bf16.mxu0 0
  %377 = vmatpush1.bf16.msra.mxu0 %v354
  %378 = vmatprep.subr.bf16.mxu0 0
  %379 = vmatpush1.bf16.msra.mxu0 %v355
  %380 = vmatprep.subr.bf16.mxu0 0
  %381 = vmatpush1.bf16.msra.mxu0 0
  %382 = vmatprep.subr.bf16.mxu0 0
  %383 = vmatpush1.bf16.msra.mxu0 0
  %384 = vmatprep.subr.bf16.mxu0 0
  %385 = vmatpush1.bf16.msra.mxu0 0
  %386 = vmatprep.subr.bf16.mxu0 0
  %387 = vmatpush1.bf16.msra.mxu0 0
  %388 = vmatprep.subr.bf16.mxu0 0
  %389 = vmatpush1.bf16.msra.mxu0 0
  %390 = vmatprep.subr.bf16.mxu0 0
  %391 = vmatpush1.bf16.msra.mxu0 0
  %392 = vmatprep.subr.bf16.mxu0 0
  %393 = vmatpush1.bf16.msra.mxu0 0
  %394 = vmatprep.subr.bf16.mxu0 0
  %395 = vmatpush1.bf16.msra.mxu0 0
  %396 = vmatprep.mubr.bf16.mxu0 0
  %397 = vmatmul.mubr.bf16.gmra.mrb[0].mxu0 %v291
  %v398 = vpop.f32.mrb[0].mxu0
  %v399 = vadd.f32 %v314, %v398
  %v400 = vpop.f32.mrb[0].mxu0
  %v401 = vpop.f32.mrb[0].mxu0
  %v402 = vadd.f32 %v314, %v401
  %v403 = vpop.f32.mrb[0].mxu0
  %404 = vmatprep.mubr.bf16.mxu0 0
  %405 = vmatmul.mubr.bf16.gmra.mrb[0].mxu0 %v292
  %v406 = vpop.f32.mrb[0].mxu0
  %v407 = vadd.f32 %v314, %v406
  %v408 = vpop.f32.mrb[0].mxu0
  %v409 = vpop.f32.mrb[0].mxu0
  %v410 = vadd.f32 %v314, %v409
  %v411 = vpop.f32.mrb[0].mxu0
  %412 = vdwg.mxu0
  %v413 = vpack.c.bf16 %v402, %v399
  %v414 = vpack.c.bf16 %v410, %v407
  %v417 = vunpack.c.l.b16 %v413
  %v418 = vunpack.c.h.b16 %v413
  %v419 = vunpack.c.l.b16 %v414
  %v420 = vunpack.c.h.b16 %v414
  %v421 = vpack.c.b16 %v417, %v417
  %v422 = vpack.c.b16 %v418, %v418
  %v423 = vpack.c.b16 %v419, %v419
  %v424 = vpack.c.b16 %v420, %v420
  %429 = vst [vmem:[%s4] sm:$0xf] %v421
  %430 = vst [vmem:[%s4 + $0x4] sm:$0xf] %v422
  %431 = vst [vmem:[%s4 + $0x8] sm:$0xf] %v423
  %432 = vst [vmem:[%s4 + $0xc] sm:$0xf] %v424
  // Predicated region
  $region18: #{patch_extractor_forward.1} parent=0 // pred_check
    _
  $region19: #{patch_extractor_forward.1} parent=0 // pred_check_branch
    %434 = sbr.rel (0) target = $region21
  $region20: #{patch_extractor_forward.1} parent=0 // pred_region
    _
  $region21: #{patch_extractor_forward.1} parent=0 // pred_fallthru
    _
  // Predicated region
  $region22: #{patch_extractor_forward.1} parent=0 // pred_check
    _
  $region23: #{patch_extractor_forward.1} parent=0 // pred_check_branch
    %436 = sbr.rel (0) target = $region25
  $region24: #{patch_extractor_forward.1} parent=0 // pred_region
    _
  $region25: #{patch_extractor_forward.1} parent=0 // pred_fallthru
    _

</llo_original>
